<compile_context>
chip_gen: v7x
topology: tpu7x:2x2x1
jax: 0.10.0
libtpu: 0.0.40
codegen_flags: <defaults>
</compile_context>

<pallas_src>
import random

import numpy as np
import jax
import jax.numpy as jnp
from jax.experimental import pallas as pl
from jax.experimental.pallas import tpu as pltpu

RELATIONS = [
    'CountryBordersWithCountry', 'CountryOfficialLanguage', 'StateSharesBorderState',
    'RiverBasinsCountry', 'ChemicalCompoundElement', 'PersonLanguage', 'PersonProfession',
    'PersonInstrument', 'PersonEmployer', 'PersonPlaceOfDeath', 'PersonCauseOfDeath',
    'CompanyParentOrganization'
]

LANE = 128        # lanes used for the lane-dense loss output
MAX_B_BLK = 128   # instances per grid step (multiple of 8; ~3.5 MiB VMEM double-buffered)
NEG_BIG = -1e30   # host-side pad value for weight rows; exp(NEG_BIG - m) == 0 in f32


def _round_up(x, m):
    return ((x + m - 1) // m) * m


def prompt_weights_kernel(scores_ref, w_ref, cnt_t_ref, cnt_f_ref, asb_ref, loss_ref):
    """One grid step = B_BLK (relation, example) instances, fully vectorized.

    scores_ref : VMEM (B_BLK, LS_pad, K_pad) -- prompt scores (L on sublanes, keys on lanes)
    w_ref      : VMEM (B_BLK, LS_pad, 1)     -- relation weights as a column; pad rows = -1e30
    cnt_t_ref  : VMEM (B_BLK, K_pad)         -- true-pair counts / n_tot
    cnt_f_ref  : VMEM (B_BLK, K_pad)         -- sampled-false counts / n_tot
    asb_ref    : VMEM (B_BLK, K_pad)         -- per-key aggregated scores (lane-dense)
    loss_ref   : VMEM (B_BLK, LANE)          -- per-instance L1 loss broadcast across lanes
    """
    # softmax over the weight column; padded rows hold -1e30 so exp(w - m) is exactly 0
    w = w_ref[...]                                           # (B_BLK, LS_pad, 1)
    m = jnp.max(w, axis=1, keepdims=True)                    # (B_BLK, 1, 1)
    e = jnp.exp(w - m)                                       # (B_BLK, LS_pad, 1)
    w_soft = e / jnp.sum(e, axis=1, keepdims=True)           # (B_BLK, LS_pad, 1)

    # per-key aggregated score: asb[b, k] = sum_l scores[b, l, k] * w_soft[b, l]
    asb = jnp.sum(scores_ref[...] * w_soft, axis=1)          # (B_BLK, K_pad)
    asb_ref[...] = asb

    # mean L1 loss; counts are pre-divided by n_tot on the host -> plain sum over lanes
    err = cnt_t_ref[...] * jnp.abs(asb - 1.0) + cnt_f_ref[...] * jnp.abs(asb)
    loss = jnp.sum(err, axis=-1, keepdims=True)              # (B_BLK, 1)
    loss_ref[...] = jnp.broadcast_to(loss, loss_ref.shape)   # dense, unmasked store


@jax.jit
def run_prompt_weights(scores_t, w_col, cnt_true, cnt_false):
    B_pad, LS_pad, K_pad = scores_t.shape
    B_BLK = min(MAX_B_BLK, B_pad)       # B_pad is a multiple of B_BLK by construction
    num_blocks = B_pad // B_BLK

    grid_spec = pl.GridSpec(
        grid=(num_blocks,),
        in_specs=[
            pl.BlockSpec((B_BLK, LS_pad, K_pad), lambda b: (b, 0, 0)),
            pl.BlockSpec((B_BLK, LS_pad, 1),     lambda b: (b, 0, 0)),
            pl.BlockSpec((B_BLK, K_pad),         lambda b: (b, 0)),
            pl.BlockSpec((B_BLK, K_pad),         lambda b: (b, 0)),
        ],
        out_specs=[
            pl.BlockSpec((B_BLK, K_pad), lambda b: (b, 0)),
            pl.BlockSpec((B_BLK, LANE),  lambda b: (b, 0)),
        ],
    )
    out_shapes = (
        jax.ShapeDtypeStruct((B_pad, K_pad), jnp.float32),   # asb per key (lane-dense)
        jax.ShapeDtypeStruct((B_pad, LANE), jnp.float32),    # per-instance loss (col 0)
    )
    return pl.pallas_call(
        prompt_weights_kernel,
        out_shape=out_shapes,
        grid_spec=grid_spec,
        compiler_params=pltpu.CompilerParams(
            dimension_semantics=("parallel",)),   # batch-block axis: shards across TCs on v7x
    )(scores_t, w_col, cnt_true, cnt_false)


class PromptWeightsPallas:
    """JAX/Pallas port of the PyTorch PromptWeights module (forward only)."""

    K_BUCKET = 128   # fixed shape buckets -> single cached compile per batch-size bucket
    L_BUCKET = 8

    def __init__(self, num_prompts_per_rel, prng_key):
        self.num_prompts_per_rel = dict(num_prompts_per_rel)
        self.weights = {}
        # Deterministic init matching torch: 2 * rand(P+1) - 1  (uniform in [-1, 1))
        keys = jax.random.split(prng_key, len(RELATIONS))
        for rel, k in zip(RELATIONS, keys):
            n = num_prompts_per_rel[rel] + 1
            w = jax.random.uniform(k, (n,), dtype=jnp.float32, minval=-1.0, maxval=1.0)
            self.weights[rel] = np.asarray(w)   # host copy: cheap numpy packing

    # ------------------------------------------------------------------ #
    def forward(self, rel, pred_scores, gold_objs):
        # Single-instance API, matching the PyTorch forward signature.
        return self.forward_batch([(rel, pred_scores, gold_objs)])[0]

    def forward_batch(self, items):
        """items: list of (rel, pred_scores dict, gold_objs list). One pallas_call total."""
        results = [None] * len(items)
        packed = []   # (pos, keys, rows(K,L), w(L,), true_cnt(K,), false_cnt(K,), L)

        for pos, (rel, pred_scores, gold_objs) in enumerate(items):
            keys = list(pred_scores.keys())
            L = self.num_prompts_per_rel[rel] + 1
            w = self.weights[rel]
            assert w.shape[0] == L

            true_cnt = np.zeros((len(keys),), dtype=np.float32)
            false_pairs = []
            for kidx, key in enumerate(keys):
                curr = list(pred_scores[key]) + [1.0]
                assert len(curr) == L
                for gold_synset in gold_objs:
                    assert isinstance(gold_synset, list)
                    if key in gold_synset:
                        true_cnt[kidx] += 1.0
                    else:
                        false_pairs.append(kidx)

            n_true = int(true_cnt.sum())
            if n_true == 0 and len(false_pairs) == 0:
                results[pos] = ({}, None)
                continue

            false_sample_size = round(n_true * 2 + 1)
            false_sample = (random.sample(false_pairs, k=false_sample_size)
                            if false_sample_size < len(false_pairs) else false_pairs)
            false_cnt = np.zeros((len(keys),), dtype=np.float32)
            for kidx in false_sample:
                false_cnt[kidx] += 1.0

            rows = np.asarray([list(pred_scores[k]) + [1.0] for k in keys],
                              dtype=np.float32)                       # (K, L)
            packed.append((pos, keys, rows, w, true_cnt, false_cnt, L))

        if not packed:
            return results

        B = len(packed)
        K_pad = _round_up(max(self.K_BUCKET, max(len(p[1]) for p in packed)), 128)
        LS_pad = _round_up(max(self.L_BUCKET, max(p[6] for p in packed)), 8)
        B_BLK = min(MAX_B_BLK, _round_up(B, 8))
        B_pad = _round_up(B, B_BLK)          # every grid block is full

        # host-side numpy packing; one device transfer per array for the whole batch.
        # Padded weight rows (and whole padded instances) hold -1e30 -> softmax mass 0;
        # padded instances have zero counts -> loss 0, never NaN.
        scores_t = np.zeros((B_pad, LS_pad, K_pad), dtype=np.float32)
        w_col = np.full((B_pad, LS_pad, 1), NEG_BIG, dtype=np.float32)
        cnt_true = np.zeros((B_pad, K_pad), dtype=np.float32)
        cnt_false = np.zeros((B_pad, K_pad), dtype=np.float32)
        for b, (pos, keys, rows, w, tc, fc, L) in enumerate(packed):
            K = len(keys)
            scores_t[b, :L, :K] = rows.T
            w_col[b, :L, 0] = w
            n_tot = float(tc.sum() + fc.sum())     # > 0 (empty instances skipped above)
            cnt_true[b, :K] = tc / n_tot           # fold 1/n_tot into counts host-side
            cnt_false[b, :K] = fc / n_tot

        asb_dev, loss_dev = run_prompt_weights(
            jnp.asarray(scores_t), jnp.asarray(w_col),
            jnp.asarray(cnt_true), jnp.asarray(cnt_false))
        jax.block_until_ready((asb_dev, loss_dev))

        asb_host = np.asarray(asb_dev)    # single device->host copy for all keys / instances
        loss_host = np.asarray(loss_dev)

        for b, (pos, keys, *_rest) in enumerate(packed):
            asb_dict = {key: float(asb_host[b, i]) for i, key in enumerate(keys)}
            results[pos] = (asb_dict, float(loss_host[b, 0]))
        return results
        # TODO(synk): forward-only port; no gradient path to self.weights (the PyTorch
        # module trains these parameters via autograd).


if __name__ == "__main__":
    random.seed(0)

    num_prompts = 4  # prompts per relation -> weight vectors of length 5
    num_prompts_per_rel = {rel: num_prompts for rel in RELATIONS}
    model = PromptWeightsPallas(num_prompts_per_rel, jax.random.PRNGKey(0))

    # Build a small batch of 3 relation instances; all go through ONE batched pallas_call.
    rng = jax.random.PRNGKey(1)
    items = []
    n_objs = 6
    for i, rel in enumerate(['PersonLanguage', 'PersonProfession', 'CountryOfficialLanguage']):
        rng, sub = jax.random.split(rng)
        vals = np.asarray(jax.random.uniform(sub, (n_objs, num_prompts), dtype=jnp.float32))
        pred_scores = {f"obj_{j}": [float(v) for v in vals[j]] for j in range(n_objs)}
        # one gold synset with 3 keys -> 3 true pairs, 3 false pairs; false_sample_size = 7 >= 3,
        # so no subsampling occurs and the reference loss below is deterministic.
        gold_objs = [["obj_0", "obj_2", f"obj_{(i + 3) % n_objs}"]]
        items.append((rel, pred_scores, gold_objs))

    results = model.forward_batch(items)

    # correctness check vs. pure numpy reference (asb scores and L1 loss)
    for (rel, pred_scores, gold_objs), (asb_dict, loss) in zip(items, results):
        w = model.weights[rel].astype(np.float64)
        w_soft = np.exp(w - w.max())
        w_soft = w_soft / w_soft.sum()
        preds, labels = [], []
        for key in pred_scores:
            curr = np.asarray(list(pred_scores[key]) + [1.0], dtype=np.float64)
            ref_asb = float(curr @ w_soft)
            assert abs(ref_asb - asb_dict[key]) < 1e-4, (key, ref_asb, asb_dict[key])
            for gold_synset in gold_objs:
                preds.append(ref_asb)
                labels.append(1.0 if key in gold_synset else 0.0)
        ref_loss = float(np.mean(np.abs(np.asarray(preds) - np.asarray(labels))))
        assert np.isfinite(loss)
        assert abs(ref_loss - loss) < 1e-4, (ref_loss, loss)

    # also exercise the single-item API (matches the PyTorch forward signature)
    asb_dict_1, loss_1 = model.forward(*items[0])
    assert abs(loss_1 - results[0][1]) < 1e-6

    print("KERNEL_OK")
</pallas_src>

<mosaic_0001>
module attributes {stable_mosaic.version = 11 : i64} {
  func.func @prompt_weights_kernel(%arg0: i32, %arg1: memref<8x8x128xf32, #tpu.memory_space<vmem>>, %arg2: memref<8x8x1xf32, #tpu.memory_space<vmem>>, %arg3: memref<8x128xf32, #tpu.memory_space<vmem>>, %arg4: memref<8x128xf32, #tpu.memory_space<vmem>>, %arg5: memref<8x128xf32, #tpu.memory_space<vmem>>, %arg6: memref<8x128xf32, #tpu.memory_space<vmem>>) attributes {dimension_semantics = [#tpu.dimension_semantics<parallel>], iteration_bounds = array<i64: 1>, scalar_prefetch = 0 : i64, scratch_operands = 0 : i64, tpu.core_type = #tpu.core_type<tc>, window_params = [{transform_indices = @transform_0, window_bounds = array<i64: 8, 8, 128>}, {transform_indices = @transform_1, window_bounds = array<i64: 8, 8, 1>}, {transform_indices = @transform_2, window_bounds = array<i64: 8, 128>}, {transform_indices = @transform_3, window_bounds = array<i64: 8, 128>}, {transform_indices = @transform_4, window_bounds = array<i64: 8, 128>}, {transform_indices = @transform_5, window_bounds = array<i64: 8, 128>}]} {
    %c0 = arith.constant 0 : index
    %c0_0 = arith.constant 0 : index
    %c0_1 = arith.constant 0 : index
    %0 = vector.load %arg2[%c0, %c0_0, %c0_1] : memref<8x8x1xf32, #tpu.memory_space<vmem>>, vector<8x8x1xf32>
    %cst = arith.constant dense<0xFF800000> : vector<8x1xf32>
    %1 = vector.multi_reduction <maximumf>, %0, %cst [1] : vector<8x8x1xf32> to vector<8x1xf32>
    %2 = vector.shape_cast %1 : vector<8x1xf32> to vector<8x1x1xf32>
    %3 = vector.broadcast %2 : vector<8x1x1xf32> to vector<8x8x1xf32>
    %4 = arith.subf %0, %3 : vector<8x8x1xf32>
    %5 = math.exp %4 : vector<8x8x1xf32>
    %cst_2 = arith.constant dense<0.000000e+00> : vector<8x1xf32>
    %6 = vector.multi_reduction <add>, %5, %cst_2 [1] : vector<8x8x1xf32> to vector<8x1xf32>
    %7 = vector.shape_cast %6 : vector<8x1xf32> to vector<8x1x1xf32>
    %8 = vector.broadcast %7 : vector<8x1x1xf32> to vector<8x8x1xf32>
    %9 = arith.divf %5, %8 : vector<8x8x1xf32>
    %c0_3 = arith.constant 0 : index
    %c0_4 = arith.constant 0 : index
    %c0_5 = arith.constant 0 : index
    %10 = vector.load %arg1[%c0_3, %c0_4, %c0_5] : memref<8x8x128xf32, #tpu.memory_space<vmem>>, vector<8x8x128xf32>
    %11 = vector.broadcast %9 : vector<8x8x1xf32> to vector<8x8x128xf32>
    %12 = arith.mulf %10, %11 : vector<8x8x128xf32>
    %cst_6 = arith.constant dense<0.000000e+00> : vector<8x128xf32>
    %13 = vector.multi_reduction <add>, %12, %cst_6 [1] : vector<8x8x128xf32> to vector<8x128xf32>
    %c0_7 = arith.constant 0 : index
    %c0_8 = arith.constant 0 : index
    %14 = vector.load %arg5[%c0_7, %c0_8] : memref<8x128xf32, #tpu.memory_space<vmem>>, vector<8x128xf32>
    tpu.vector_store %arg5[%c0_7, %c0_8], %13 {strides = array<i32>} : memref<8x128xf32, #tpu.memory_space<vmem>>, vector<8x128xf32>,
    %c0_9 = arith.constant 0 : index
    %c0_10 = arith.constant 0 : index
    %15 = vector.load %arg3[%c0_9, %c0_10] : memref<8x128xf32, #tpu.memory_space<vmem>>, vector<8x128xf32>
    %cst_11 = arith.constant 1.000000e+00 : f32
    %16 = vector.broadcast %cst_11 : f32 to vector<8x128xf32>
    %17 = arith.subf %13, %16 : vector<8x128xf32>
    %18 = math.absf %17 : vector<8x128xf32>
    %19 = arith.mulf %15, %18 : vector<8x128xf32>
    %c0_12 = arith.constant 0 : index
    %c0_13 = arith.constant 0 : index
    %20 = vector.load %arg4[%c0_12, %c0_13] : memref<8x128xf32, #tpu.memory_space<vmem>>, vector<8x128xf32>
    %21 = math.absf %13 : vector<8x128xf32>
    %22 = arith.mulf %20, %21 : vector<8x128xf32>
    %23 = arith.addf %19, %22 : vector<8x128xf32>
    %cst_14 = arith.constant dense<0.000000e+00> : vector<8xf32>
    %24 = vector.multi_reduction <add>, %23, %cst_14 [1] : vector<8x128xf32> to vector<8xf32>
    %25 = vector.shape_cast %24 : vector<8xf32> to vector<8x1xf32>
    %26 = vector.shape_cast %25 : vector<8x1xf32> to vector<8x1xf32>
    %27 = vector.broadcast %26 : vector<8x1xf32> to vector<8x128xf32>
    %c0_15 = arith.constant 0 : index
    %c0_16 = arith.constant 0 : index
    %28 = vector.load %arg6[%c0_15, %c0_16] : memref<8x128xf32, #tpu.memory_space<vmem>>, vector<8x128xf32>
    tpu.vector_store %arg6[%c0_15, %c0_16], %27 {strides = array<i32>} : memref<8x128xf32, #tpu.memory_space<vmem>>, vector<8x128xf32>,
    return
  }
  func.func @transform_0(%arg0: i32) -> (i32, i32, i32) {
    %c0_i32 = arith.constant 0 : i32
    %c0_i32_0 = arith.constant 0 : i32
    %c0_i32_1 = arith.constant 0 : i32
    return %arg0, %c0_i32, %c0_i32_0 : i32, i32, i32
  }
  func.func @transform_1(%arg0: i32) -> (i32, i32, i32) {
    %c0_i32 = arith.constant 0 : i32
    %c0_i32_0 = arith.constant 0 : i32
    %c0_i32_1 = arith.constant 0 : i32
    return %arg0, %c0_i32, %c0_i32_0 : i32, i32, i32
  }
  func.func @transform_2(%arg0: i32) -> (i32, i32) {
    %c0_i32 = arith.constant 0 : i32
    %c0_i32_0 = arith.constant 0 : i32
    return %arg0, %c0_i32 : i32, i32
  }
  func.func @transform_3(%arg0: i32) -> (i32, i32) {
    %c0_i32 = arith.constant 0 : i32
    %c0_i32_0 = arith.constant 0 : i32
    return %arg0, %c0_i32 : i32, i32
  }
  func.func @transform_4(%arg0: i32) -> (i32, i32) {
    %c0_i32 = arith.constant 0 : i32
    %c0_i32_0 = arith.constant 0 : i32
    return %arg0, %c0_i32 : i32, i32
  }
  func.func @transform_5(%arg0: i32) -> (i32, i32) {
    %c0_i32 = arith.constant 0 : i32
    %c0_i32_0 = arith.constant 0 : i32
    return %arg0, %c0_i32 : i32, i32
  }
}

</mosaic_0001>

<llo_original>
// kernel: run_prompt_weights.1
$region0: #{run_prompt_weights.1}
  #allocation0 [shape = 'u32[]', space=smem, size = 0x4, offset = 0x4, fixed_abs, tag = 'smem constant byte address 0x4 - core index']
  #allocation1 [shape = 'u32[144,128]{1,0:T(1,128)}', space=vmem, size = 0x12000, scoped, tag = 'internal scratch']
  %s0 = inlined_call_operand.vmem [shape: f32[8,8,128], index: 0, kind: input, shape index: {}]
  %s1 = inlined_call_operand.vmem [shape: f32[8,8,1], index: 1, kind: input, shape index: {}]
  %s2 = inlined_call_operand.vmem [shape: f32[8,128], index: 2, kind: input, shape index: {}]
  %s3 = inlined_call_operand.vmem [shape: f32[8,128], index: 3, kind: input, shape index: {}]
  %s4 = inlined_call_operand.hbm [shape: f32[8,128], index: 4, kind: output, shape index: {0}]
  %s5 = inlined_call_operand.hbm [shape: f32[8,128], index: 5, kind: output, shape index: {1}]
  %6 = xla_tuple %s4, %s5
  %s7 = sld [smem:[#allocation0]]
  $region34: #{run_prompt_weights.1} parent=0
    _
  %s9 = ssub.s32 1, %s7
  %s10 = scalar_select 0, %s9, %s7
  $region1: #{run_prompt_weights.1} parent=0
    #allocation2 [shape = 'u8[4096]{0}', space=vmem, size = 0x1000, scoped, tag = 'output window, operand 0, single buffered']
    #allocation3 [shape = 's32[1]{0}', space=sflag, size = 0x4, scoped, tag = 'scoped memory for run_prompt_weights.1']
    #allocation4 [shape = 'u8[4096]{0}', space=vmem, size = 0x1000, scoped, tag = 'output window, operand 1, single buffered']
    #allocation5 [shape = 's32[1]{0}', space=sflag, size = 0x4, scoped, tag = 'scoped memory for run_prompt_weights.1']
    %11 = vsyncpa [#allocation3], 0
    %12 = vsyncpa [#allocation5], 0
    // Predicated region
    $region2: #{run_prompt_weights.1} parent=1 // pred_check
      _
    $region3: #{run_prompt_weights.1} parent=1 // pred_check_branch
      %14 = sbr.rel (0) target = $region5
    $region4: #{run_prompt_weights.1} parent=1 // pred_region
      _
    $region5: #{run_prompt_weights.1} parent=1 // pred_fallthru
      _
    // Predicated region
    $region6: #{run_prompt_weights.1} parent=1 // pred_check
      _
    $region7: #{run_prompt_weights.1} parent=1 // pred_check_branch
      %16 = sbr.rel (0) target = $region9
    $region8: #{run_prompt_weights.1} parent=1 // pred_region
      _
    $region9: #{run_prompt_weights.1} parent=1 // pred_fallthru
      _
    // Predicated region
    $region10: #{run_prompt_weights.1} parent=1 // pred_check
      _
    $region11: #{run_prompt_weights.1} parent=1 // pred_check_branch
      %18 = sbr.rel (0) target = $region13
    $region12: #{run_prompt_weights.1} parent=1 // pred_region
      _
    $region13: #{run_prompt_weights.1} parent=1 // pred_fallthru
      _
    // Predicated region
    $region14: #{run_prompt_weights.1} parent=1 // pred_check
      _
    $region15: #{run_prompt_weights.1} parent=1 // pred_check_branch
      %20 = sbr.rel (0) target = $region17
    $region16: #{run_prompt_weights.1} parent=1 // pred_region
      _
    $region17: #{run_prompt_weights.1} parent=1 // pred_fallthru
      _
    %v21 = vld [vmem:[%s1] sm:$0xff]
    %v22 = vld [vmem:[%s1 + $0x8] sm:$0xff]
    %v23 = vld [vmem:[%s1 + $0x10] sm:$0xff]
    %v24 = vld [vmem:[%s1 + $0x18] sm:$0xff]
    %v25 = vld [vmem:[%s1 + $0x20] sm:$0xff]
    %v26 = vld [vmem:[%s1 + $0x28] sm:$0xff]
    %v27 = vld [vmem:[%s1 + $0x30] sm:$0xff]
    %v28 = vld [vmem:[%s1 + $0x38] sm:$0xff]
    %vm29 = vcmask 7168
    %v30 = vsel %vm29, %v21, -inf
    %v31 = vrot.slane %v30, 4
    %v32 = vmax.f32 %v30, %v31
    %v33 = vrot.slane %v32, 2
    %v34 = vmax.f32 %v32, %v33
    %v35 = vrot.slane %v34, 1
    %v36 = vmax.f32 %v34, %v35
    %v37 = vsel %vm29, %v22, -inf
    %v38 = vrot.slane %v37, 4
    %v39 = vmax.f32 %v37, %v38
    %v40 = vrot.slane %v39, 2
    %v41 = vmax.f32 %v39, %v40
    %v42 = vrot.slane %v41, 1
    %v43 = vmax.f32 %v41, %v42
    %v44 = vsel %vm29, %v23, -inf
    %v45 = vrot.slane %v44, 4
    %v46 = vmax.f32 %v44, %v45
    %v47 = vrot.slane %v46, 2
    %v48 = vmax.f32 %v46, %v47
    %v49 = vrot.slane %v48, 1
    %v50 = vmax.f32 %v48, %v49
    %v51 = vsel %vm29, %v24, -inf
    %v52 = vrot.slane %v51, 4
    %v53 = vmax.f32 %v51, %v52
    %v54 = vrot.slane %v53, 2
    %v55 = vmax.f32 %v53, %v54
    %v56 = vrot.slane %v55, 1
    %v57 = vmax.f32 %v55, %v56
    %v58 = vsel %vm29, %v25, -inf
    %v59 = vrot.slane %v58, 4
    %v60 = vmax.f32 %v58, %v59
    %v61 = vrot.slane %v60, 2
    %v62 = vmax.f32 %v60, %v61
    %v63 = vrot.slane %v62, 1
    %v64 = vmax.f32 %v62, %v63
    %v65 = vsel %vm29, %v26, -inf
    %v66 = vrot.slane %v65, 4
    %v67 = vmax.f32 %v65, %v66
    %v68 = vrot.slane %v67, 2
    %v69 = vmax.f32 %v67, %v68
    %v70 = vrot.slane %v69, 1
    %v71 = vmax.f32 %v69, %v70
    %v72 = vsel %vm29, %v27, -inf
    %v73 = vrot.slane %v72, 4
    %v74 = vmax.f32 %v72, %v73
    %v75 = vrot.slane %v74, 2
    %v76 = vmax.f32 %v74, %v75
    %v77 = vrot.slane %v76, 1
    %v78 = vmax.f32 %v76, %v77
    %v79 = vsel %vm29, %v28, -inf
    %v80 = vrot.slane %v79, 4
    %v81 = vmax.f32 %v79, %v80
    %v82 = vrot.slane %v81, 2
    %v83 = vmax.f32 %v81, %v82
    %v84 = vrot.slane %v83, 1
    %v85 = vmax.f32 %v83, %v84
    %v86 = vsub.f32 %v21, %v36
    %v87 = vsub.f32 %v22, %v43
    %v88 = vsub.f32 %v23, %v50
    %v89 = vsub.f32 %v24, %v57
    %v90 = vsub.f32 %v25, %v64
    %v91 = vsub.f32 %v26, %v71
    %v92 = vsub.f32 %v27, %v78
    %v93 = vsub.f32 %v28, %v85
    %v94 = vmul.f32 %v86, 1.442695
    %v95 = vpow.pop %v94
    %v96 = vmul.f32 %v87, 1.442695
    %v97 = vpow.pop %v96
    %v98 = vmul.f32 %v88, 1.442695
    %v99 = vpow.pop %v98
    %v100 = vmul.f32 %v89, 1.442695
    %v101 = vpow.pop %v100
    %v102 = vmul.f32 %v90, 1.442695
    %v103 = vpow.pop %v102
    %v104 = vmul.f32 %v91, 1.442695
    %v105 = vpow.pop %v104
    %v106 = vmul.f32 %v92, 1.442695
    %v107 = vpow.pop %v106
    %v108 = vmul.f32 %v93, 1.442695
    %v109 = vpow.pop %v108
    %v110 = vsel %vm29, %v95, 0.0
    %v111 = vrot.slane %v110, 4
    %v112 = vadd.f32 %v110, %v111
    %v113 = vrot.slane %v112, 2
    %v114 = vadd.f32 %v112, %v113
    %v115 = vrot.slane %v114, 1
    %v116 = vadd.f32 %v114, %v115
    %v117 = vsel %vm29, %v97, 0.0
    %v118 = vrot.slane %v117, 4
    %v119 = vadd.f32 %v117, %v118
    %v120 = vrot.slane %v119, 2
    %v121 = vadd.f32 %v119, %v120
    %v122 = vrot.slane %v121, 1
    %v123 = vadd.f32 %v121, %v122
    %v124 = vsel %vm29, %v99, 0.0
    %v125 = vrot.slane %v124, 4
    %v126 = vadd.f32 %v124, %v125
    %v127 = vrot.slane %v126, 2
    %v128 = vadd.f32 %v126, %v127
    %v129 = vrot.slane %v128, 1
    %v130 = vadd.f32 %v128, %v129
    %v131 = vsel %vm29, %v101, 0.0
    %v132 = vrot.slane %v131, 4
    %v133 = vadd.f32 %v131, %v132
    %v134 = vrot.slane %v133, 2
    %v135 = vadd.f32 %v133, %v134
    %v136 = vrot.slane %v135, 1
    %v137 = vadd.f32 %v135, %v136
    %v138 = vsel %vm29, %v103, 0.0
    %v139 = vrot.slane %v138, 4
    %v140 = vadd.f32 %v138, %v139
    %v141 = vrot.slane %v140, 2
    %v142 = vadd.f32 %v140, %v141
    %v143 = vrot.slane %v142, 1
    %v144 = vadd.f32 %v142, %v143
    %v145 = vsel %vm29, %v105, 0.0
    %v146 = vrot.slane %v145, 4
    %v147 = vadd.f32 %v145, %v146
    %v148 = vrot.slane %v147, 2
    %v149 = vadd.f32 %v147, %v148
    %v150 = vrot.slane %v149, 1
    %v151 = vadd.f32 %v149, %v150
    %v152 = vsel %vm29, %v107, 0.0
    %v153 = vrot.slane %v152, 4
    %v154 = vadd.f32 %v152, %v153
    %v155 = vrot.slane %v154, 2
    %v156 = vadd.f32 %v154, %v155
    %v157 = vrot.slane %v156, 1
    %v158 = vadd.f32 %v156, %v157
    %v159 = vsel %vm29, %v109, 0.0
    %v160 = vrot.slane %v159, 4
    %v161 = vadd.f32 %v159, %v160
    %v162 = vrot.slane %v161, 2
    %v163 = vadd.f32 %v161, %v162
    %v164 = vrot.slane %v163, 1
    %v165 = vadd.f32 %v163, %v164
    %v166 = vrcp.pop %v116
    %v167 = vmul.f32 %v95, %v166
    %v168 = vrcp.pop %v123
    %v169 = vmul.f32 %v97, %v168
    %v170 = vrcp.pop %v130
    %v171 = vmul.f32 %v99, %v170
    %v172 = vrcp.pop %v137
    %v173 = vmul.f32 %v101, %v172
    %v174 = vrcp.pop %v144
    %v175 = vmul.f32 %v103, %v174
    %v176 = vrcp.pop %v151
    %v177 = vmul.f32 %v105, %v176
    %v178 = vrcp.pop %v158
    %v179 = vmul.f32 %v107, %v178
    %v180 = vrcp.pop %v165
    %v181 = vmul.f32 %v109, %v180
    %v182 = vld [vmem:[%s0] sm:$0xff]
    %v183 = vld [vmem:[%s0 + $0x8] sm:$0xff]
    %v184 = vld [vmem:[%s0 + $0x10] sm:$0xff]
    %v185 = vld [vmem:[%s0 + $0x18] sm:$0xff]
    %v186 = vld [vmem:[%s0 + $0x20] sm:$0xff]
    %v187 = vld [vmem:[%s0 + $0x28] sm:$0xff]
    %v188 = vld [vmem:[%s0 + $0x30] sm:$0xff]
    %v189 = vld [vmem:[%s0 + $0x38] sm:$0xff]
    %191 = vset.pattern.permute.xlu0 0
    %192 = vperm.xlu0 %191, %v167
    %v193 = vpop.permute.xlu0 %192
    %196 = vset.pattern.permute.xlu0 0
    %197 = vperm.xlu0 %196, %v169
    %v198 = vpop.permute.xlu0 %197
    %201 = vset.pattern.permute.xlu0 0
    %202 = vperm.xlu0 %201, %v171
    %v203 = vpop.permute.xlu0 %202
    %206 = vset.pattern.permute.xlu0 0
    %207 = vperm.xlu0 %206, %v173
    %v208 = vpop.permute.xlu0 %207
    %211 = vset.pattern.permute.xlu0 0
    %212 = vperm.xlu0 %211, %v175
    %v213 = vpop.permute.xlu0 %212
    %216 = vset.pattern.permute.xlu0 0
    %217 = vperm.xlu0 %216, %v177
    %v218 = vpop.permute.xlu0 %217
    %221 = vset.pattern.permute.xlu0 0
    %222 = vperm.xlu0 %221, %v179
    %v223 = vpop.permute.xlu0 %222
    %226 = vset.pattern.permute.xlu0 0
    %227 = vperm.xlu0 %226, %v181
    %v228 = vpop.permute.xlu0 %227
    %v230 = vmul.f32 %v182, %v193
    %v231 = vmul.f32 %v183, %v198
    %v232 = vmul.f32 %v184, %v203
    %v233 = vmul.f32 %v185, %v208
    %v234 = vmul.f32 %v186, %v213
    %v235 = vmul.f32 %v187, %v218
    %v236 = vmul.f32 %v188, %v223
    %v237 = vmul.f32 %v189, %v228
    %v238 = vrot.slane %v230, 4
    %v239 = vadd.f32 %v230, %v238
    %v240 = vrot.slane %v239, 2
    %v241 = vadd.f32 %v239, %v240
    %v242 = vrot.slane %v241, 1
    %v243 = vadd.f32 %v241, %v242
    %v244 = vrot.slane %v231, 4
    %v245 = vadd.f32 %v231, %v244
    %v246 = vrot.slane %v245, 2
    %v247 = vadd.f32 %v245, %v246
    %v248 = vrot.slane %v247, 1
    %v249 = vadd.f32 %v247, %v248
    %v250 = vrot.slane %v232, 4
    %v251 = vadd.f32 %v232, %v250
    %v252 = vrot.slane %v251, 2
    %v253 = vadd.f32 %v251, %v252
    %v254 = vrot.slane %v253, 1
    %v255 = vadd.f32 %v253, %v254
    %v256 = vrot.slane %v233, 4
    %v257 = vadd.f32 %v233, %v256
    %v258 = vrot.slane %v257, 2
    %v259 = vadd.f32 %v257, %v258
    %v260 = vrot.slane %v259, 1
    %v261 = vadd.f32 %v259, %v260
    %v262 = vrot.slane %v234, 4
    %v263 = vadd.f32 %v234, %v262
    %v264 = vrot.slane %v263, 2
    %v265 = vadd.f32 %v263, %v264
    %v266 = vrot.slane %v265, 1
    %v267 = vadd.f32 %v265, %v266
    %v268 = vrot.slane %v235, 4
    %v269 = vadd.f32 %v235, %v268
    %v270 = vrot.slane %v269, 2
    %v271 = vadd.f32 %v269, %v270
    %v272 = vrot.slane %v271, 1
    %v273 = vadd.f32 %v271, %v272
    %v274 = vrot.slane %v236, 4
    %v275 = vadd.f32 %v236, %v274
    %v276 = vrot.slane %v275, 2
    %v277 = vadd.f32 %v275, %v276
    %v278 = vrot.slane %v277, 1
    %v279 = vadd.f32 %v277, %v278
    %v280 = vrot.slane %v237, 4
    %v281 = vadd.f32 %v237, %v280
    %v282 = vrot.slane %v281, 2
    %v283 = vadd.f32 %v281, %v282
    %v284 = vrot.slane %v283, 1
    %v285 = vadd.f32 %v283, %v284
    %vm294 = vcmask 1041409
    %v295 = vsel %vm294, %v249, %v243
    %vm296 = vcmask 1042434
    %v297 = vsel %vm296, %v255, %v295
    %vm298 = vcmask 1043459
    %v299 = vsel %vm298, %v261, %v297
    %vm300 = vcmask 1044484
    %v301 = vsel %vm300, %v267, %v299
    %vm302 = vcmask 1045509
    %v303 = vsel %vm302, %v273, %v301
    %vm304 = vcmask 1046534
    %v305 = vsel %vm304, %v279, %v303
    %vm306 = vcmask 1047559
    %v307 = vsel %vm306, %v285, %v305
    %309 = vst [vmem:[#allocation2] sm:$0xff] %v307
    %v310 = vld [vmem:[%s2] sm:$0xff]
    %v311 = vsub.f32 %v243, 1.0
    %v312 = vsub.f32 %v249, 1.0
    %v313 = vsub.f32 %v255, 1.0
    %v314 = vsub.f32 %v261, 1.0
    %v315 = vsub.f32 %v267, 1.0
    %v316 = vsub.f32 %v273, 1.0
    %v317 = vsub.f32 %v279, 1.0
    %v318 = vsub.f32 %v285, 1.0
    %v319 = vand.u32 2147483647, %v311
    %v320 = vand.u32 2147483647, %v312
    %v321 = vand.u32 2147483647, %v313
    %v322 = vand.u32 2147483647, %v314
    %v323 = vand.u32 2147483647, %v315
    %v324 = vand.u32 2147483647, %v316
    %v325 = vand.u32 2147483647, %v317
    %v326 = vand.u32 2147483647, %v318
    %v335 = vsel %vm294, %v320, %v319
    %v336 = vsel %vm296, %v321, %v335
    %v337 = vsel %vm298, %v322, %v336
    %v338 = vsel %vm300, %v323, %v337
    %v339 = vsel %vm302, %v324, %v338
    %v340 = vsel %vm304, %v325, %v339
    %v341 = vsel %vm306, %v326, %v340
    %v343 = vmul.f32 %v310, %v341
    %v344 = vld [vmem:[%s3] sm:$0xff]
    %v345 = vand.u32 2147483647, %v243
    %v346 = vand.u32 2147483647, %v249
    %v347 = vand.u32 2147483647, %v255
    %v348 = vand.u32 2147483647, %v261
    %v349 = vand.u32 2147483647, %v267
    %v350 = vand.u32 2147483647, %v273
    %v351 = vand.u32 2147483647, %v279
    %v352 = vand.u32 2147483647, %v285
    %v361 = vsel %vm294, %v346, %v345
    %v362 = vsel %vm296, %v347, %v361
    %v363 = vsel %vm298, %v348, %v362
    %v364 = vsel %vm300, %v349, %v363
    %v365 = vsel %vm302, %v350, %v364
    %v366 = vsel %vm304, %v351, %v365
    %v367 = vsel %vm306, %v352, %v366
    %v369 = vmul.f32 %v344, %v367
    %v370 = vadd.f32 %v343, %v369
    %371 = vadd.xlane.f32.xlu0 %v370
    %v372 = vpop.xlane.xlu0 %371
    %373 = vst [vmem:[#allocation4] sm:$0xff] %v372
    // Predicated region
    $region18: #{run_prompt_weights.1} parent=1 // pred_check
      _
    $region19: #{run_prompt_weights.1} parent=1 // pred_check_branch
      %375 = sbr.rel (0) target = $region21
    $region20: #{run_prompt_weights.1} parent=1 // pred_region
      %s377 = ssub.s32 128, 128
      %378 = vsyncadd [#allocation3], %s377
      %s380 = sshll.u32 [#allocation2], 4
      %s381 = int_to_ptr.vmem [resolvable:$true] %s380
      %383 = dma.vmem_to_hbm [thread:$0]  %s381, 128, %s4, [#allocation3]
    $region21: #{run_prompt_weights.1} parent=1 // pred_fallthru
      _
    // Predicated region
    $region22: #{run_prompt_weights.1} parent=1 // pred_check
      _
    $region23: #{run_prompt_weights.1} parent=1 // pred_check_branch
      %385 = sbr.rel (0) target = $region25
    $region24: #{run_prompt_weights.1} parent=1 // pred_region
      %s387 = ssub.s32 128, 128
      %388 = vsyncadd [#allocation5], %s387
      %s390 = sshll.u32 [#allocation4], 4
      %s391 = int_to_ptr.vmem [resolvable:$true] %s390
      %393 = dma.vmem_to_hbm [thread:$0]  %s391, 128, %s5, [#allocation5]
    $region25: #{run_prompt_weights.1} parent=1 // pred_fallthru
      _
    // Predicated region
    $region26: #{run_prompt_weights.1} parent=1 // pred_check
      _
    $region27: #{run_prompt_weights.1} parent=1 // pred_check_branch
      %395 = sbr.rel (0) target = $region29
    $region28: #{run_prompt_weights.1} parent=1 // pred_region
      %396 = dma.done [#allocation3], 128
    $region29: #{run_prompt_weights.1} parent=1 // pred_fallthru
      _
    // Predicated region
    $region30: #{run_prompt_weights.1} parent=1 // pred_check
      _
    $region31: #{run_prompt_weights.1} parent=1 // pred_check_branch
      %398 = sbr.rel (0) target = $region33
    $region32: #{run_prompt_weights.1} parent=1 // pred_region
      %399 = dma.done [#allocation5], 128
    $region33: #{run_prompt_weights.1} parent=1 // pred_fallthru
      _
    %400 = vsyncpa [#allocation3], 1
    %401 = vsyncpa [#allocation5], 1

</llo_original>
